<compile_context>
chip_gen: v7x
topology: tpu7x:2x2x1
jax: 0.10.0
libtpu: 0.0.40
codegen_flags: <defaults>
</compile_context>

<pallas_src>
import functools

import jax
import jax.numpy as jnp
from jax.experimental import pallas as pl
from jax.experimental.pallas import tpu as pltpu


def _round_up(x, m):
    return (x + m - 1) // m * m


# ----------------------------- Pallas kernel -------------------------------
def lang_rnn_kernel(tok_ref, wih_ref, whh_ref, bias_ref, whd_ref, bhd_ref,
                    z_ref, hT_ref, hs_ref, *, seq_len, batch_pad):
    """Fused Elman-RNN recurrence + batched LM head (padded, lane-dense).

    tok_ref  : (T*Bp, 1)    int32 token ids, time-major (row = t*Bp + b);
                            padded rows hold an out-of-range id (-> zero row)
    wih_ref  : (Vp, Hp)     W_ih^T  (row v = input projection of token v)
    whh_ref  : (Hp, Hp)     W_hh^T
    bias_ref : (1, Hp)      b_ih + b_hh (folded)
    whd_ref  : (Hp, Vp)     W_head^T
    bhd_ref  : (1, Vp)      b_head
    z_ref    : (T*Bp, Vp)   logits, time-major, lane-dense
    hT_ref   : (Bp, Hp)     final hidden state
    hs_ref   : (T*Bp, Hp)   scratch: per-step hidden states (head GEMM input)
    """
    T, Bp = seq_len, batch_pad
    Hp = whh_ref.shape[0]
    Vp = wih_ref.shape[0]

    whh = whh_ref[...]
    bias = bias_ref[...]

    # --- 1) Input projection: one-hot(tokens) @ W_ih^T as a single MXU op. ---
    # One VPU compare against a lane iota replaces T*B scalar-indexed gathers.
    tok = tok_ref[...]                                              # (T*Bp, 1)
    col = jax.lax.broadcasted_iota(jnp.int32, (T * Bp, Vp), 1)      # lane iota
    onehot = (col == tok).astype(jnp.float32)                       # (T*Bp, Vp)
    xs = jnp.dot(onehot, wih_ref[...],
                 preferred_element_type=jnp.float32)                # (T*Bp, Hp)

    # --- 2) Recurrence: h_t = tanh(x_t + h_{t-1} @ W_hh^T + bias).
    #        Fully unrolled (static trip count); each h_t goes straight to an
    #        aligned (8, 128) tile of the scratch ref. ---
    h = jnp.zeros((Bp, Hp), jnp.float32)
    for t in range(T):
        pre = (xs[t * Bp:(t + 1) * Bp, :]
               + jnp.dot(h, whh, preferred_element_type=jnp.float32)
               + bias)
        h = jnp.tanh(pre)
        hs_ref[pl.ds(t * Bp, Bp), :] = h
    hT_ref[...] = h

    # --- 3) LM head: ONE batched lane-dense GEMM (T*Bp, Hp) @ (Hp, Vp). ---
    z_ref[...] = (jnp.dot(hs_ref[...], whd_ref[...],
                          preferred_element_type=jnp.float32)
                  + bhd_ref[...])


# ------------------------------- Wrapper ------------------------------------
@functools.partial(jax.jit, static_argnames=("vocab_size", "hidden_size"))
def lang_model_forward(x_tokens, params, *, vocab_size, hidden_size):
    """Equivalent of LangModel.forward(x) with states=None.

    x_tokens : (B, T) int32 token ids
    Returns (z, (h, c)) with z: (B, T, vocab), h: (1, B, hidden), c: None.
    """
    B, T = x_tokens.shape
    V, H = vocab_size, hidden_size
    f32 = jnp.float32

    # Padded / aligned shapes: 8 sublanes for batch, 128 lanes for H and V.
    Bp = _round_up(max(B, 8), 8)
    Hp = _round_up(H, 128)
    Vp = _round_up(V, 128)

    # Layout plumbing: pre-transpose weights, zero-pad, fold the two biases.
    wih_t = jnp.zeros((Vp, Hp), f32).at[:V, :H].set(params["w_ih"].T.astype(f32))
    whh_t = jnp.zeros((Hp, Hp), f32).at[:H, :H].set(params["w_hh"].T.astype(f32))
    bias = jnp.zeros((1, Hp), f32).at[0, :H].set(
        (params["b_ih"] + params["b_hh"]).astype(f32))
    whd_t = jnp.zeros((Hp, Vp), f32).at[:H, :V].set(params["w_head"].T.astype(f32))
    bhd = jnp.zeros((1, Vp), f32).at[0, :V].set(params["b_head"].astype(f32))

    # Token ids, time-major, batch-padded with an out-of-range id (Vp) so the
    # in-kernel one-hot rows of the padding are exactly zero.
    tok = jnp.full((T, Bp), Vp, jnp.int32).at[:, :B].set(
        jnp.transpose(x_tokens, (1, 0)).astype(jnp.int32))
    tok = tok.reshape(T * Bp, 1)

    vmem = pl.BlockSpec(memory_space=pltpu.MemorySpace.VMEM)

    flops = (2 * T * Bp * Vp * Hp      # one-hot input projection
             + 2 * T * Bp * Hp * Hp    # recurrence matmuls
             + 2 * T * Bp * Hp * Vp)   # LM head
    bytes_accessed = 4 * (T * Bp                     # tokens (int32)
                          + Vp * Hp + Hp * Hp + Hp   # wih, whh, bias
                          + Hp * Vp + Vp             # whd, bhd
                          + T * Bp * Vp + Bp * Hp)   # z, hT
    cost = pl.CostEstimate(flops=flops,
                           transcendentals=T * Bp * Hp,   # tanh
                           bytes_accessed=bytes_accessed)

    kernel = functools.partial(lang_rnn_kernel, seq_len=T, batch_pad=Bp)

    z_pad, h_pad = pl.pallas_call(
        kernel,
        out_shape=(jax.ShapeDtypeStruct((T * Bp, Vp), f32),
                   jax.ShapeDtypeStruct((Bp, Hp), f32)),
        in_specs=[vmem, vmem, vmem, vmem, vmem, vmem],
        out_specs=(vmem, vmem),
        scratch_shapes=[pltpu.VMEM((T * Bp, Hp), f32)],
        cost_estimate=cost,
    )(tok, wih_t, whh_t, bias, whd_t, bhd)

    z = jnp.transpose(z_pad.reshape(T, Bp, Vp), (1, 0, 2))[:B, :, :V]  # (B,T,V)
    h = h_pad[:B, :H][None]                                           # (1,B,H)
    c = None  # cell_type == 'rnn' -> RNN_factory.empty_state()
    return z, (h, c)


# ----------------------- Pure-JAX reference (checker) -----------------------
def reference_forward(x_tokens, params, vocab_size, hidden_size):
    B, T = x_tokens.shape
    x_oh = jax.nn.one_hot(x_tokens, vocab_size, dtype=jnp.float32)
    h = jnp.zeros((B, hidden_size), jnp.float32)
    zs = []
    for t in range(T):
        h = jnp.tanh(x_oh[:, t] @ params["w_ih"].T + params["b_ih"]
                     + h @ params["w_hh"].T + params["b_hh"])
        zs.append(h @ params["w_head"].T + params["b_head"])
    return jnp.stack(zs, axis=1), h


# --------------------------------- Main --------------------------------------
if __name__ == "__main__":
    # Small shapes consistent with the module: batch=2, seq=8, vocab=32, hidden=32.
    B, T, V, H = 2, 8, 32, 32

    key = jax.random.PRNGKey(0)
    k_tok, k_wih, k_whh, k_bih, k_bhh, k_whd = jax.random.split(key, 6)

    # Deterministic parameter init.
    # RNN weights: PyTorch-style U(-1/sqrt(H), 1/sqrt(H)).
    bound = 1.0 / (H ** 0.5)
    params = {
        "w_ih": jax.random.uniform(k_wih, (H, V), jnp.float32, -bound, bound),
        "w_hh": jax.random.uniform(k_whh, (H, H), jnp.float32, -bound, bound),
        "b_ih": jax.random.uniform(k_bih, (H,), jnp.float32, -bound, bound),
        "b_hh": jax.random.uniform(k_bhh, (H,), jnp.float32, -bound, bound),
        # Head: xavier_normal_ -> std = sqrt(2 / (fan_in + fan_out)).
        "w_head": jax.random.normal(k_whd, (V, H), jnp.float32)
                  * (2.0 / (H + V)) ** 0.5,
        "b_head": jnp.zeros((V,), jnp.float32),
    }

    x_tokens = jax.random.randint(k_tok, (B, T), 0, V, dtype=jnp.int32)

    (z, (h, c)) = lang_model_forward(
        x_tokens, params, vocab_size=V, hidden_size=H)
    z = jax.block_until_ready(z)
    h = jax.block_until_ready(h)

    # Correctness check against the pure-JAX reference.
    z_ref, h_ref = reference_forward(x_tokens, params, V, H)
    assert z.shape == (B, T, V) and h.shape == (1, B, H)
    assert jnp.allclose(z, z_ref, atol=1e-5, rtol=1e-5), "logits mismatch"
    assert jnp.allclose(h[0], h_ref, atol=1e-5, rtol=1e-5), "hidden mismatch"

    print("KERNEL_OK")
</pallas_src>

<mosaic_0001>
module attributes {stable_mosaic.version = 11 : i64} {
  func.func @lang_rnn_kernel(%arg0: memref<64x1xi32, #tpu.memory_space<vmem>>, %arg1: memref<128x128xf32, #tpu.memory_space<vmem>>, %arg2: memref<128x128xf32, #tpu.memory_space<vmem>>, %arg3: memref<1x128xf32, #tpu.memory_space<vmem>>, %arg4: memref<128x128xf32, #tpu.memory_space<vmem>>, %arg5: memref<1x128xf32, #tpu.memory_space<vmem>>, %arg6: memref<64x128xf32, #tpu.memory_space<vmem>>, %arg7: memref<8x128xf32, #tpu.memory_space<vmem>>, %arg8: memref<64x128xf32, #tpu.memory_space<vmem>>) attributes {dimension_semantics = [], scalar_prefetch = 0 : i64, scratch_operands = 1 : i64, tpu.core_type = #tpu.core_type<tc>} {
    %c0 = arith.constant 0 : index
    %c0_0 = arith.constant 0 : index
    %0 = vector.load %arg2[%c0, %c0_0] : memref<128x128xf32, #tpu.memory_space<vmem>>, vector<128x128xf32>
    %c0_1 = arith.constant 0 : index
    %c0_2 = arith.constant 0 : index
    %1 = vector.load %arg3[%c0_1, %c0_2] : memref<1x128xf32, #tpu.memory_space<vmem>>, vector<1x128xf32>
    %c0_3 = arith.constant 0 : index
    %c0_4 = arith.constant 0 : index
    %2 = vector.load %arg0[%c0_3, %c0_4] : memref<64x1xi32, #tpu.memory_space<vmem>>, vector<64x1xi32>
    %3 = tpu.iota {dimensions = array<i32: 1>} : vector<64x128xi32>
    %4 = vector.broadcast %2 : vector<64x1xi32> to vector<64x128xi32>
    %5 = arith.cmpi eq, %3, %4 : vector<64x128xi32>
    %6 = arith.extui %5 : vector<64x128xi1> to vector<64x128xi32>
    %7 = arith.sitofp %6 : vector<64x128xi32> to vector<64x128xf32>
    %c0_5 = arith.constant 0 : index
    %c0_6 = arith.constant 0 : index
    %8 = vector.load %arg1[%c0_5, %c0_6] : memref<128x128xf32, #tpu.memory_space<vmem>>, vector<128x128xf32>
    %cst = arith.constant dense<0.000000e+00> : vector<64x128xf32>
    %9 = tpu.matmul %7, %8, %cst {dimension_numbers = #tpu.dot_dimension_numbers<[1], [0], [0], [1], [0, 0, 1, 1], [], []>} : vector<64x128xf32>, vector<128x128xf32>, vector<64x128xf32> -> vector<64x128xf32>
    %cst_7 = arith.constant 0.000000e+00 : f32
    %10 = vector.broadcast %cst_7 : f32 to vector<8x128xf32>
    %11 = vector.extract_strided_slice %9 {offsets = [0, 0], sizes = [8, 128], strides = [1, 1]} : vector<64x128xf32> to vector<8x128xf32>
    %cst_8 = arith.constant dense<0.000000e+00> : vector<8x128xf32>
    %12 = tpu.matmul %10, %0, %cst_8 {dimension_numbers = #tpu.dot_dimension_numbers<[1], [0], [0], [1], [0, 0, 1, 1], [], []>} : vector<8x128xf32>, vector<128x128xf32>, vector<8x128xf32> -> vector<8x128xf32>
    %13 = arith.addf %11, %12 : vector<8x128xf32>
    %14 = vector.broadcast %1 : vector<1x128xf32> to vector<8x128xf32>
    %15 = arith.addf %13, %14 : vector<8x128xf32>
    %16 = math.tanh %15 : vector<8x128xf32>
    %c0_9 = arith.constant 0 : index
    %c0_10 = arith.constant 0 : index
    %17 = vector.load %arg8[%c0_9, %c0_10] : memref<64x128xf32, #tpu.memory_space<vmem>>, vector<8x128xf32>
    tpu.vector_store %arg8[%c0_9, %c0_10], %16 {strides = array<i32>} : memref<64x128xf32, #tpu.memory_space<vmem>>, vector<8x128xf32>,
    %18 = vector.extract_strided_slice %9 {offsets = [8, 0], sizes = [8, 128], strides = [1, 1]} : vector<64x128xf32> to vector<8x128xf32>
    %cst_11 = arith.constant dense<0.000000e+00> : vector<8x128xf32>
    %19 = tpu.matmul %16, %0, %cst_11 {dimension_numbers = #tpu.dot_dimension_numbers<[1], [0], [0], [1], [0, 0, 1, 1], [], []>} : vector<8x128xf32>, vector<128x128xf32>, vector<8x128xf32> -> vector<8x128xf32>
    %20 = arith.addf %18, %19 : vector<8x128xf32>
    %21 = vector.broadcast %1 : vector<1x128xf32> to vector<8x128xf32>
    %22 = arith.addf %20, %21 : vector<8x128xf32>
    %23 = math.tanh %22 : vector<8x128xf32>
    %c8 = arith.constant 8 : index
    %c0_12 = arith.constant 0 : index
    %24 = vector.load %arg8[%c8, %c0_12] : memref<64x128xf32, #tpu.memory_space<vmem>>, vector<8x128xf32>
    tpu.vector_store %arg8[%c8, %c0_12], %23 {strides = array<i32>} : memref<64x128xf32, #tpu.memory_space<vmem>>, vector<8x128xf32>,
    %25 = vector.extract_strided_slice %9 {offsets = [16, 0], sizes = [8, 128], strides = [1, 1]} : vector<64x128xf32> to vector<8x128xf32>
    %cst_13 = arith.constant dense<0.000000e+00> : vector<8x128xf32>
    %26 = tpu.matmul %23, %0, %cst_13 {dimension_numbers = #tpu.dot_dimension_numbers<[1], [0], [0], [1], [0, 0, 1, 1], [], []>} : vector<8x128xf32>, vector<128x128xf32>, vector<8x128xf32> -> vector<8x128xf32>
    %27 = arith.addf %25, %26 : vector<8x128xf32>
    %28 = vector.broadcast %1 : vector<1x128xf32> to vector<8x128xf32>
    %29 = arith.addf %27, %28 : vector<8x128xf32>
    %30 = math.tanh %29 : vector<8x128xf32>
    %c16 = arith.constant 16 : index
    %c0_14 = arith.constant 0 : index
    %31 = vector.load %arg8[%c16, %c0_14] : memref<64x128xf32, #tpu.memory_space<vmem>>, vector<8x128xf32>
    tpu.vector_store %arg8[%c16, %c0_14], %30 {strides = array<i32>} : memref<64x128xf32, #tpu.memory_space<vmem>>, vector<8x128xf32>,
    %32 = vector.extract_strided_slice %9 {offsets = [24, 0], sizes = [8, 128], strides = [1, 1]} : vector<64x128xf32> to vector<8x128xf32>
    %cst_15 = arith.constant dense<0.000000e+00> : vector<8x128xf32>
    %33 = tpu.matmul %30, %0, %cst_15 {dimension_numbers = #tpu.dot_dimension_numbers<[1], [0], [0], [1], [0, 0, 1, 1], [], []>} : vector<8x128xf32>, vector<128x128xf32>, vector<8x128xf32> -> vector<8x128xf32>
    %34 = arith.addf %32, %33 : vector<8x128xf32>
    %35 = vector.broadcast %1 : vector<1x128xf32> to vector<8x128xf32>
    %36 = arith.addf %34, %35 : vector<8x128xf32>
    %37 = math.tanh %36 : vector<8x128xf32>
    %c24 = arith.constant 24 : index
    %c0_16 = arith.constant 0 : index
    %38 = vector.load %arg8[%c24, %c0_16] : memref<64x128xf32, #tpu.memory_space<vmem>>, vector<8x128xf32>
    tpu.vector_store %arg8[%c24, %c0_16], %37 {strides = array<i32>} : memref<64x128xf32, #tpu.memory_space<vmem>>, vector<8x128xf32>,
    %39 = vector.extract_strided_slice %9 {offsets = [32, 0], sizes = [8, 128], strides = [1, 1]} : vector<64x128xf32> to vector<8x128xf32>
    %cst_17 = arith.constant dense<0.000000e+00> : vector<8x128xf32>
    %40 = tpu.matmul %37, %0, %cst_17 {dimension_numbers = #tpu.dot_dimension_numbers<[1], [0], [0], [1], [0, 0, 1, 1], [], []>} : vector<8x128xf32>, vector<128x128xf32>, vector<8x128xf32> -> vector<8x128xf32>
    %41 = arith.addf %39, %40 : vector<8x128xf32>
    %42 = vector.broadcast %1 : vector<1x128xf32> to vector<8x128xf32>
    %43 = arith.addf %41, %42 : vector<8x128xf32>
    %44 = math.tanh %43 : vector<8x128xf32>
    %c32 = arith.constant 32 : index
    %c0_18 = arith.constant 0 : index
    %45 = vector.load %arg8[%c32, %c0_18] : memref<64x128xf32, #tpu.memory_space<vmem>>, vector<8x128xf32>
    tpu.vector_store %arg8[%c32, %c0_18], %44 {strides = array<i32>} : memref<64x128xf32, #tpu.memory_space<vmem>>, vector<8x128xf32>,
    %46 = vector.extract_strided_slice %9 {offsets = [40, 0], sizes = [8, 128], strides = [1, 1]} : vector<64x128xf32> to vector<8x128xf32>
    %cst_19 = arith.constant dense<0.000000e+00> : vector<8x128xf32>
    %47 = tpu.matmul %44, %0, %cst_19 {dimension_numbers = #tpu.dot_dimension_numbers<[1], [0], [0], [1], [0, 0, 1, 1], [], []>} : vector<8x128xf32>, vector<128x128xf32>, vector<8x128xf32> -> vector<8x128xf32>
    %48 = arith.addf %46, %47 : vector<8x128xf32>
    %49 = vector.broadcast %1 : vector<1x128xf32> to vector<8x128xf32>
    %50 = arith.addf %48, %49 : vector<8x128xf32>
    %51 = math.tanh %50 : vector<8x128xf32>
    %c40 = arith.constant 40 : index
    %c0_20 = arith.constant 0 : index
    %52 = vector.load %arg8[%c40, %c0_20] : memref<64x128xf32, #tpu.memory_space<vmem>>, vector<8x128xf32>
    tpu.vector_store %arg8[%c40, %c0_20], %51 {strides = array<i32>} : memref<64x128xf32, #tpu.memory_space<vmem>>, vector<8x128xf32>,
    %53 = vector.extract_strided_slice %9 {offsets = [48, 0], sizes = [8, 128], strides = [1, 1]} : vector<64x128xf32> to vector<8x128xf32>
    %cst_21 = arith.constant dense<0.000000e+00> : vector<8x128xf32>
    %54 = tpu.matmul %51, %0, %cst_21 {dimension_numbers = #tpu.dot_dimension_numbers<[1], [0], [0], [1], [0, 0, 1, 1], [], []>} : vector<8x128xf32>, vector<128x128xf32>, vector<8x128xf32> -> vector<8x128xf32>
    %55 = arith.addf %53, %54 : vector<8x128xf32>
    %56 = vector.broadcast %1 : vector<1x128xf32> to vector<8x128xf32>
    %57 = arith.addf %55, %56 : vector<8x128xf32>
    %58 = math.tanh %57 : vector<8x128xf32>
    %c48 = arith.constant 48 : index
    %c0_22 = arith.constant 0 : index
    %59 = vector.load %arg8[%c48, %c0_22] : memref<64x128xf32, #tpu.memory_space<vmem>>, vector<8x128xf32>
    tpu.vector_store %arg8[%c48, %c0_22], %58 {strides = array<i32>} : memref<64x128xf32, #tpu.memory_space<vmem>>, vector<8x128xf32>,
    %60 = vector.extract_strided_slice %9 {offsets = [56, 0], sizes = [8, 128], strides = [1, 1]} : vector<64x128xf32> to vector<8x128xf32>
    %cst_23 = arith.constant dense<0.000000e+00> : vector<8x128xf32>
    %61 = tpu.matmul %58, %0, %cst_23 {dimension_numbers = #tpu.dot_dimension_numbers<[1], [0], [0], [1], [0, 0, 1, 1], [], []>} : vector<8x128xf32>, vector<128x128xf32>, vector<8x128xf32> -> vector<8x128xf32>
    %62 = arith.addf %60, %61 : vector<8x128xf32>
    %63 = vector.broadcast %1 : vector<1x128xf32> to vector<8x128xf32>
    %64 = arith.addf %62, %63 : vector<8x128xf32>
    %65 = math.tanh %64 : vector<8x128xf32>
    %c56 = arith.constant 56 : index
    %c0_24 = arith.constant 0 : index
    %66 = vector.load %arg8[%c56, %c0_24] : memref<64x128xf32, #tpu.memory_space<vmem>>, vector<8x128xf32>
    tpu.vector_store %arg8[%c56, %c0_24], %65 {strides = array<i32>} : memref<64x128xf32, #tpu.memory_space<vmem>>, vector<8x128xf32>,
    %c0_25 = arith.constant 0 : index
    %c0_26 = arith.constant 0 : index
    %67 = vector.load %arg7[%c0_25, %c0_26] : memref<8x128xf32, #tpu.memory_space<vmem>>, vector<8x128xf32>
    tpu.vector_store %arg7[%c0_25, %c0_26], %65 {strides = array<i32>} : memref<8x128xf32, #tpu.memory_space<vmem>>, vector<8x128xf32>,
    %c0_27 = arith.constant 0 : index
    %c0_28 = arith.constant 0 : index
    %68 = vector.load %arg8[%c0_27, %c0_28] : memref<64x128xf32, #tpu.memory_space<vmem>>, vector<64x128xf32>
    %c0_29 = arith.constant 0 : index
    %c0_30 = arith.constant 0 : index
    %69 = vector.load %arg4[%c0_29, %c0_30] : memref<128x128xf32, #tpu.memory_space<vmem>>, vector<128x128xf32>
    %cst_31 = arith.constant dense<0.000000e+00> : vector<64x128xf32>
    %70 = tpu.matmul %68, %69, %cst_31 {dimension_numbers = #tpu.dot_dimension_numbers<[1], [0], [0], [1], [0, 0, 1, 1], [], []>} : vector<64x128xf32>, vector<128x128xf32>, vector<64x128xf32> -> vector<64x128xf32>
    %c0_32 = arith.constant 0 : index
    %c0_33 = arith.constant 0 : index
    %71 = vector.load %arg5[%c0_32, %c0_33] : memref<1x128xf32, #tpu.memory_space<vmem>>, vector<1x128xf32>
    %72 = vector.broadcast %71 : vector<1x128xf32> to vector<64x128xf32>
    %73 = arith.addf %70, %72 : vector<64x128xf32>
    %c0_34 = arith.constant 0 : index
    %c0_35 = arith.constant 0 : index
    %74 = vector.load %arg6[%c0_34, %c0_35] : memref<64x128xf32, #tpu.memory_space<vmem>>, vector<64x128xf32>
    tpu.vector_store %arg6[%c0_34, %c0_35], %73 {strides = array<i32>} : memref<64x128xf32, #tpu.memory_space<vmem>>, vector<64x128xf32>,
    return
  }
}

</mosaic_0001>

<llo_original>
// kernel: lang_model_forward.1
$region0: #{lang_model_forward.1}
  #allocation0 [shape = 'u32[]', space=smem, size = 0x4, offset = 0x4, fixed_abs, tag = 'smem constant byte address 0x4 - core index']
  #allocation1 [shape = 'u32[144,128]{1,0:T(1,128)}', space=vmem, size = 0x12000, scoped, tag = 'internal scratch']
  #allocation2 [shape = 'f32[64,128]{1,0:T(8,128)}', space=vmem, size = 0x8000, scoped, tag = 'scratch operand']
  %s0 = inlined_call_operand.vmem [shape: s32[64,1], index: 0, kind: input, shape index: {}]
  %s1 = inlined_call_operand.vmem [shape: f32[128,128], index: 1, kind: input, shape index: {}]
  %s2 = inlined_call_operand.vmem [shape: f32[128,128], index: 2, kind: input, shape index: {}]
  %s3 = inlined_call_operand.vmem [shape: f32[1,128], index: 3, kind: input, shape index: {}]
  %s4 = inlined_call_operand.vmem [shape: f32[128,128], index: 4, kind: input, shape index: {}]
  %s5 = inlined_call_operand.vmem [shape: f32[1,128], index: 5, kind: input, shape index: {}]
  %s6 = inlined_call_operand.vmem [shape: f32[64,128], index: 6, kind: output, shape index: {0}]
  %s7 = inlined_call_operand.vmem [shape: f32[8,128], index: 7, kind: output, shape index: {1}]
  %8 = xla_tuple %s6, %s7
  %s9 = sld [smem:[#allocation0]]
  $region42: #{lang_model_forward.1} parent=0
    _
  %s11 = ssub.s32 1, %s9
  %s12 = scalar_select 0, %s11, %s9
  // Predicated region
  $region2: #{lang_model_forward.1} parent=0 // pred_check
    _
  $region3: #{lang_model_forward.1} parent=0 // pred_check_branch
    %14 = sbr.rel (0) target = $region5
  $region4: #{lang_model_forward.1} parent=0 // pred_region
    _
  $region5: #{lang_model_forward.1} parent=0 // pred_fallthru
    _
  // Predicated region
  $region6: #{lang_model_forward.1} parent=0 // pred_check
    _
  $region7: #{lang_model_forward.1} parent=0 // pred_check_branch
    %16 = sbr.rel (0) target = $region9
  $region8: #{lang_model_forward.1} parent=0 // pred_region
    _
  $region9: #{lang_model_forward.1} parent=0 // pred_fallthru
    _
  // Predicated region
  $region10: #{lang_model_forward.1} parent=0 // pred_check
    _
  $region11: #{lang_model_forward.1} parent=0 // pred_check_branch
    %18 = sbr.rel (0) target = $region13
  $region12: #{lang_model_forward.1} parent=0 // pred_region
    _
  $region13: #{lang_model_forward.1} parent=0 // pred_fallthru
    _
  // Predicated region
  $region14: #{lang_model_forward.1} parent=0 // pred_check
    _
  $region15: #{lang_model_forward.1} parent=0 // pred_check_branch
    %20 = sbr.rel (0) target = $region17
  $region16: #{lang_model_forward.1} parent=0 // pred_region
    _
  $region17: #{lang_model_forward.1} parent=0 // pred_fallthru
    _
  // Predicated region
  $region18: #{lang_model_forward.1} parent=0 // pred_check
    _
  $region19: #{lang_model_forward.1} parent=0 // pred_check_branch
    %22 = sbr.rel (0) target = $region21
  $region20: #{lang_model_forward.1} parent=0 // pred_region
    _
  $region21: #{lang_model_forward.1} parent=0 // pred_fallthru
    _
  // Predicated region
  $region22: #{lang_model_forward.1} parent=0 // pred_check
    _
  $region23: #{lang_model_forward.1} parent=0 // pred_check_branch
    %24 = sbr.rel (0) target = $region25
  $region24: #{lang_model_forward.1} parent=0 // pred_region
    _
  $region25: #{lang_model_forward.1} parent=0 // pred_fallthru
    _
  %v25 = vld [vmem:[%s2] sm:$0xff]
  %v26 = vld [vmem:[%s2 + $0x8] sm:$0xff]
  %v27 = vld [vmem:[%s2 + $0x10] sm:$0xff]
  %v28 = vld [vmem:[%s2 + $0x18] sm:$0xff]
  %v29 = vld [vmem:[%s2 + $0x20] sm:$0xff]
  %v30 = vld [vmem:[%s2 + $0x28] sm:$0xff]
  %v31 = vld [vmem:[%s2 + $0x30] sm:$0xff]
  %v32 = vld [vmem:[%s2 + $0x38] sm:$0xff]
  %v33 = vld [vmem:[%s2 + $0x40] sm:$0xff]
  %v34 = vld [vmem:[%s2 + $0x48] sm:$0xff]
  %v35 = vld [vmem:[%s2 + $0x50] sm:$0xff]
  %v36 = vld [vmem:[%s2 + $0x58] sm:$0xff]
  %v37 = vld [vmem:[%s2 + $0x60] sm:$0xff]
  %v38 = vld [vmem:[%s2 + $0x68] sm:$0xff]
  %v39 = vld [vmem:[%s2 + $0x70] sm:$0xff]
  %v40 = vld [vmem:[%s2 + $0x78] sm:$0xff]
  %v41 = vld [vmem:[%s3] sm:$0x1]
  %v42 = vld [vmem:[%s0] sm:$0xff]
  %v43 = vld [vmem:[%s0 + $0x8] sm:$0xff]
  %v44 = vld [vmem:[%s0 + $0x10] sm:$0xff]
  %v45 = vld [vmem:[%s0 + $0x18] sm:$0xff]
  %v46 = vld [vmem:[%s0 + $0x20] sm:$0xff]
  %v47 = vld [vmem:[%s0 + $0x28] sm:$0xff]
  %v48 = vld [vmem:[%s0 + $0x30] sm:$0xff]
  %v49 = vld [vmem:[%s0 + $0x38] sm:$0xff]
  %v50 = vlaneseq
  %v51 = vand.u32 %v50, 127
  %52 = vset.pattern.permute.xlu0 0
  %53 = vperm.xlu0 %52, %v42
  %v54 = vpop.permute.xlu0 %53
  %55 = vset.pattern.permute.xlu0 0
  %56 = vperm.xlu0 %55, %v43
  %v57 = vpop.permute.xlu0 %56
  %58 = vset.pattern.permute.xlu0 0
  %59 = vperm.xlu0 %58, %v44
  %v60 = vpop.permute.xlu0 %59
  %61 = vset.pattern.permute.xlu0 0
  %62 = vperm.xlu0 %61, %v45
  %v63 = vpop.permute.xlu0 %62
  %64 = vset.pattern.permute.xlu0 0
  %65 = vperm.xlu0 %64, %v46
  %v66 = vpop.permute.xlu0 %65
  %67 = vset.pattern.permute.xlu0 0
  %68 = vperm.xlu0 %67, %v47
  %v69 = vpop.permute.xlu0 %68
  %70 = vset.pattern.permute.xlu0 0
  %71 = vperm.xlu0 %70, %v48
  %v72 = vpop.permute.xlu0 %71
  %73 = vset.pattern.permute.xlu0 0
  %74 = vperm.xlu0 %73, %v49
  %v75 = vpop.permute.xlu0 %74
  %vm76 = vcmp.eq.s32.totalorder %v51, %v54
  %vm77 = vcmp.eq.s32.totalorder %v51, %v57
  %vm78 = vcmp.eq.s32.totalorder %v51, %v60
  %vm79 = vcmp.eq.s32.totalorder %v51, %v63
  %vm80 = vcmp.eq.s32.totalorder %v51, %v66
  %vm81 = vcmp.eq.s32.totalorder %v51, %v69
  %vm82 = vcmp.eq.s32.totalorder %v51, %v72
  %vm83 = vcmp.eq.s32.totalorder %v51, %v75
  %v84 = vsel %vm76, 1, 0
  %v85 = vsel %vm77, 1, 0
  %v86 = vsel %vm78, 1, 0
  %v87 = vsel %vm79, 1, 0
  %v88 = vsel %vm80, 1, 0
  %v89 = vsel %vm81, 1, 0
  %v90 = vsel %vm82, 1, 0
  %v91 = vsel %vm83, 1, 0
  %v92 = vcvt.s32.f32 %v84
  %v93 = vcvt.s32.f32 %v85
  %v94 = vcvt.s32.f32 %v86
  %v95 = vcvt.s32.f32 %v87
  %v96 = vcvt.s32.f32 %v88
  %v97 = vcvt.s32.f32 %v89
  %v98 = vcvt.s32.f32 %v90
  %v99 = vcvt.s32.f32 %v91
  %v100 = vld [vmem:[%s1] sm:$0xff]
  %v101 = vld [vmem:[%s1 + $0x8] sm:$0xff]
  %v102 = vld [vmem:[%s1 + $0x10] sm:$0xff]
  %v103 = vld [vmem:[%s1 + $0x18] sm:$0xff]
  %v104 = vld [vmem:[%s1 + $0x20] sm:$0xff]
  %v105 = vld [vmem:[%s1 + $0x28] sm:$0xff]
  %v106 = vld [vmem:[%s1 + $0x30] sm:$0xff]
  %v107 = vld [vmem:[%s1 + $0x38] sm:$0xff]
  %v108 = vld [vmem:[%s1 + $0x40] sm:$0xff]
  %v109 = vld [vmem:[%s1 + $0x48] sm:$0xff]
  %v110 = vld [vmem:[%s1 + $0x50] sm:$0xff]
  %v111 = vld [vmem:[%s1 + $0x58] sm:$0xff]
  %v112 = vld [vmem:[%s1 + $0x60] sm:$0xff]
  %v113 = vld [vmem:[%s1 + $0x68] sm:$0xff]
  %v114 = vld [vmem:[%s1 + $0x70] sm:$0xff]
  %v115 = vld [vmem:[%s1 + $0x78] sm:$0xff]
  %116 = vmatprep.subr.mxu0 0.0
  %117 = vmatpush1.msra.mxu0 %v100
  %118 = vmatprep.subr.mxu0 0.0
  %119 = vmatpush1.msra.mxu0 %v101
  %120 = vmatprep.subr.mxu0 0.0
  %121 = vmatpush1.msra.mxu0 %v102
  %122 = vmatprep.subr.mxu0 0.0
  %123 = vmatpush1.msra.mxu0 %v103
  %124 = vmatprep.subr.mxu0 0.0
  %125 = vmatpush1.msra.mxu0 %v104
  %126 = vmatprep.subr.mxu0 0.0
  %127 = vmatpush1.msra.mxu0 %v105
  %128 = vmatprep.subr.mxu0 0.0
  %129 = vmatpush1.msra.mxu0 %v106
  %130 = vmatprep.subr.mxu0 0.0
  %131 = vmatpush1.msra.mxu0 %v107
  %132 = vmatprep.subr.mxu0 0.0
  %133 = vmatpush1.msra.mxu0 %v108
  %134 = vmatprep.subr.mxu0 0.0
  %135 = vmatpush1.msra.mxu0 %v109
  %136 = vmatprep.subr.mxu0 0.0
  %137 = vmatpush1.msra.mxu0 %v110
  %138 = vmatprep.subr.mxu0 0.0
  %139 = vmatpush1.msra.mxu0 %v111
  %140 = vmatprep.subr.mxu0 0.0
  %141 = vmatpush1.msra.mxu0 %v112
  %142 = vmatprep.subr.mxu0 0.0
  %143 = vmatpush1.msra.mxu0 %v113
  %144 = vmatprep.subr.mxu0 0.0
  %145 = vmatpush1.msra.mxu0 %v114
  %146 = vmatprep.subr.mxu0 0.0
  %147 = vmatpush1.msra.mxu0 %v115
  %148 = vmatprep.subr.mxu0 0.0
  %149 = vmatpush1.msra.mxu0 0.0
  %150 = vmatprep.subr.mxu0 0.0
  %151 = vmatpush1.msra.mxu0 0.0
  %152 = vmatprep.subr.mxu0 0.0
  %153 = vmatpush1.msra.mxu0 0.0
  %154 = vmatprep.subr.mxu0 0.0
  %155 = vmatpush1.msra.mxu0 0.0
  %156 = vmatprep.subr.mxu0 0.0
  %157 = vmatpush1.msra.mxu0 0.0
  %158 = vmatprep.subr.mxu0 0.0
  %159 = vmatpush1.msra.mxu0 0.0
  %160 = vmatprep.subr.mxu0 0.0
  %161 = vmatpush1.msra.mxu0 0.0
  %162 = vmatprep.subr.mxu0 0.0
  %163 = vmatpush1.msra.mxu0 0.0
  %164 = vmatprep.subr.mxu0 0.0
  %165 = vmatpush1.msra.mxu0 0.0
  %166 = vmatprep.subr.mxu0 0.0
  %167 = vmatpush1.msra.mxu0 0.0
  %168 = vmatprep.subr.mxu0 0.0
  %169 = vmatpush1.msra.mxu0 0.0
  %170 = vmatprep.subr.mxu0 0.0
  %171 = vmatpush1.msra.mxu0 0.0
  %172 = vmatprep.subr.mxu0 0.0
  %173 = vmatpush1.msra.mxu0 0.0
  %174 = vmatprep.subr.mxu0 0.0
  %175 = vmatpush1.msra.mxu0 0.0
  %176 = vmatprep.subr.mxu0 0.0
  %177 = vmatpush1.msra.mxu0 0.0
  %178 = vmatprep.subr.mxu0 0.0
  %179 = vmatpush1.msra.mxu0 0.0
  %180 = vmatprep.mubr.f32.mxu0 0.0
  %181 = vmatmul.mubr.f32.gmra.mrb[0].mxu0 %v92
  %v182 = vpop.f32.mrb[0].mxu0
  %v183 = vadd.f32 0.0, %v182
  %v184 = vpop.f32.mrb[0].mxu0
  %185 = vmatprep.mubr.f32.mxu0 0.0
  %186 = vmatmul.mubr.f32.gmra.mrb[0].mxu0 %v93
  %v187 = vpop.f32.mrb[0].mxu0
  %v188 = vadd.f32 0.0, %v187
  %v189 = vpop.f32.mrb[0].mxu0
  %190 = vmatprep.mubr.f32.mxu0 0.0
  %191 = vmatmul.mubr.f32.gmra.mrb[0].mxu0 %v94
  %v192 = vpop.f32.mrb[0].mxu0
  %v193 = vadd.f32 0.0, %v192
  %v194 = vpop.f32.mrb[0].mxu0
  %195 = vmatprep.mubr.f32.mxu0 0.0
  %196 = vmatmul.mubr.f32.gmra.mrb[0].mxu0 %v95
  %v197 = vpop.f32.mrb[0].mxu0
  %v198 = vadd.f32 0.0, %v197
  %v199 = vpop.f32.mrb[0].mxu0
  %200 = vmatprep.mubr.f32.mxu0 0.0
  %201 = vmatmul.mubr.f32.gmra.mrb[0].mxu0 %v96
  %v202 = vpop.f32.mrb[0].mxu0
  %v203 = vadd.f32 0.0, %v202
  %v204 = vpop.f32.mrb[0].mxu0
  %205 = vmatprep.mubr.f32.mxu0 0.0
  %206 = vmatmul.mubr.f32.gmra.mrb[0].mxu0 %v97
  %v207 = vpop.f32.mrb[0].mxu0
  %v208 = vadd.f32 0.0, %v207
  %v209 = vpop.f32.mrb[0].mxu0
  %210 = vmatprep.mubr.f32.mxu0 0.0
  %211 = vmatmul.mubr.f32.gmra.mrb[0].mxu0 %v98
  %v212 = vpop.f32.mrb[0].mxu0
  %v213 = vadd.f32 0.0, %v212
  %v214 = vpop.f32.mrb[0].mxu0
  %215 = vmatprep.mubr.f32.mxu0 0.0
  %216 = vmatmul.mubr.f32.gmra.mrb[0].mxu0 %v99
  %v217 = vpop.f32.mrb[0].mxu0
  %v218 = vadd.f32 0.0, %v217
  %v219 = vpop.f32.mrb[0].mxu0
  %220 = vdwg.mxu0
  %221 = vmatprep.subr.mxu0 0.0
  %222 = vmatpush1.msra.mxu0 %v25
  %223 = vmatprep.subr.mxu0 0.0
  %224 = vmatpush1.msra.mxu0 %v26
  %225 = vmatprep.subr.mxu0 0.0
  %226 = vmatpush1.msra.mxu0 %v27
  %227 = vmatprep.subr.mxu0 0.0
  %228 = vmatpush1.msra.mxu0 %v28
  %229 = vmatprep.subr.mxu0 0.0
  %230 = vmatpush1.msra.mxu0 %v29
  %231 = vmatprep.subr.mxu0 0.0
  %232 = vmatpush1.msra.mxu0 %v30
  %233 = vmatprep.subr.mxu0 0.0
  %234 = vmatpush1.msra.mxu0 %v31
  %235 = vmatprep.subr.mxu0 0.0
  %236 = vmatpush1.msra.mxu0 %v32
  %237 = vmatprep.subr.mxu0 0.0
  %238 = vmatpush1.msra.mxu0 %v33
  %239 = vmatprep.subr.mxu0 0.0
  %240 = vmatpush1.msra.mxu0 %v34
  %241 = vmatprep.subr.mxu0 0.0
  %242 = vmatpush1.msra.mxu0 %v35
  %243 = vmatprep.subr.mxu0 0.0
  %244 = vmatpush1.msra.mxu0 %v36
  %245 = vmatprep.subr.mxu0 0.0
  %246 = vmatpush1.msra.mxu0 %v37
  %247 = vmatprep.subr.mxu0 0.0
  %248 = vmatpush1.msra.mxu0 %v38
  %249 = vmatprep.subr.mxu0 0.0
  %250 = vmatpush1.msra.mxu0 %v39
  %251 = vmatprep.subr.mxu0 0.0
  %252 = vmatpush1.msra.mxu0 %v40
  %253 = vmatprep.subr.mxu0 0.0
  %254 = vmatpush1.msra.mxu0 0.0
  %255 = vmatprep.subr.mxu0 0.0
  %256 = vmatpush1.msra.mxu0 0.0
  %257 = vmatprep.subr.mxu0 0.0
  %258 = vmatpush1.msra.mxu0 0.0
  %259 = vmatprep.subr.mxu0 0.0
  %260 = vmatpush1.msra.mxu0 0.0
  %261 = vmatprep.subr.mxu0 0.0
  %262 = vmatpush1.msra.mxu0 0.0
  %263 = vmatprep.subr.mxu0 0.0
  %264 = vmatpush1.msra.mxu0 0.0
  %265 = vmatprep.subr.mxu0 0.0
  %266 = vmatpush1.msra.mxu0 0.0
  %267 = vmatprep.subr.mxu0 0.0
  %268 = vmatpush1.msra.mxu0 0.0
  %269 = vmatprep.subr.mxu0 0.0
  %270 = vmatpush1.msra.mxu0 0.0
  %271 = vmatprep.subr.mxu0 0.0
  %272 = vmatpush1.msra.mxu0 0.0
  %273 = vmatprep.subr.mxu0 0.0
  %274 = vmatpush1.msra.mxu0 0.0
  %275 = vmatprep.subr.mxu0 0.0
  %276 = vmatpush1.msra.mxu0 0.0
  %277 = vmatprep.subr.mxu0 0.0
  %278 = vmatpush1.msra.mxu0 0.0
  %279 = vmatprep.subr.mxu0 0.0
  %280 = vmatpush1.msra.mxu0 0.0
  %281 = vmatprep.subr.mxu0 0.0
  %282 = vmatpush1.msra.mxu0 0.0
  %283 = vmatprep.subr.mxu0 0.0
  %284 = vmatpush1.msra.mxu0 0.0
  %285 = vmatprep.mubr.f32.mxu0 0.0
  %286 = vmatmul.mubr.f32.gmra.mrb[0].mxu0 0.0
  %v287 = vpop.f32.mrb[0].mxu0
  %v288 = vadd.f32 0.0, %v287
  %v289 = vpop.f32.mrb[0].mxu0
  %290 = vdwg.mxu0
  %v291 = vadd.f32 %v183, %v288
  %v293 = vlaneseq
  %v294 = vshrl.u32 %v293, 7
  %v295 = vsub.s32 0, %v294
  %v296 = vrot.slane %v41, %v295
  %v298 = vadd.f32 %v291, %v296
  %v299 = vtanh.pop %v298
  %300 = vst [vmem:[#allocation2] sm:$0xff] %v299
  %301 = vmatprep.subr.mxu0 0.0
  %302 = vmatpush1.msra.mxu0 %v25
  %303 = vmatprep.subr.mxu0 0.0
  %304 = vmatpush1.msra.mxu0 %v26
  %305 = vmatprep.subr.mxu0 0.0
  %306 = vmatpush1.msra.mxu0 %v27
  %307 = vmatprep.subr.mxu0 0.0
  %308 = vmatpush1.msra.mxu0 %v28
  %309 = vmatprep.subr.mxu0 0.0
  %310 = vmatpush1.msra.mxu0 %v29
  %311 = vmatprep.subr.mxu0 0.0
  %312 = vmatpush1.msra.mxu0 %v30
  %313 = vmatprep.subr.mxu0 0.0
  %314 = vmatpush1.msra.mxu0 %v31
  %315 = vmatprep.subr.mxu0 0.0
  %316 = vmatpush1.msra.mxu0 %v32
  %317 = vmatprep.subr.mxu0 0.0
  %318 = vmatpush1.msra.mxu0 %v33
  %319 = vmatprep.subr.mxu0 0.0
  %320 = vmatpush1.msra.mxu0 %v34
  %321 = vmatprep.subr.mxu0 0.0
  %322 = vmatpush1.msra.mxu0 %v35
  %323 = vmatprep.subr.mxu0 0.0
  %324 = vmatpush1.msra.mxu0 %v36
  %325 = vmatprep.subr.mxu0 0.0
  %326 = vmatpush1.msra.mxu0 %v37
  %327 = vmatprep.subr.mxu0 0.0
  %328 = vmatpush1.msra.mxu0 %v38
  %329 = vmatprep.subr.mxu0 0.0
  %330 = vmatpush1.msra.mxu0 %v39
  %331 = vmatprep.subr.mxu0 0.0
  %332 = vmatpush1.msra.mxu0 %v40
  %333 = vmatprep.subr.mxu0 0.0
  %334 = vmatpush1.msra.mxu0 0.0
  %335 = vmatprep.subr.mxu0 0.0
  %336 = vmatpush1.msra.mxu0 0.0
  %337 = vmatprep.subr.mxu0 0.0
  %338 = vmatpush1.msra.mxu0 0.0
  %339 = vmatprep.subr.mxu0 0.0
  %340 = vmatpush1.msra.mxu0 0.0
  %341 = vmatprep.subr.mxu0 0.0
  %342 = vmatpush1.msra.mxu0 0.0
  %343 = vmatprep.subr.mxu0 0.0
  %344 = vmatpush1.msra.mxu0 0.0
  %345 = vmatprep.subr.mxu0 0.0
  %346 = vmatpush1.msra.mxu0 0.0
  %347 = vmatprep.subr.mxu0 0.0
  %348 = vmatpush1.msra.mxu0 0.0
  %349 = vmatprep.subr.mxu0 0.0
  %350 = vmatpush1.msra.mxu0 0.0
  %351 = vmatprep.subr.mxu0 0.0
  %352 = vmatpush1.msra.mxu0 0.0
  %353 = vmatprep.subr.mxu0 0.0
  %354 = vmatpush1.msra.mxu0 0.0
  %355 = vmatprep.subr.mxu0 0.0
  %356 = vmatpush1.msra.mxu0 0.0
  %357 = vmatprep.subr.mxu0 0.0
  %358 = vmatpush1.msra.mxu0 0.0
  %359 = vmatprep.subr.mxu0 0.0
  %360 = vmatpush1.msra.mxu0 0.0
  %361 = vmatprep.subr.mxu0 0.0
  %362 = vmatpush1.msra.mxu0 0.0
  %363 = vmatprep.subr.mxu0 0.0
  %364 = vmatpush1.msra.mxu0 0.0
  %365 = vmatprep.mubr.f32.mxu0 0.0
  %366 = vmatmul.mubr.f32.gmra.mrb[0].mxu0 %v299
  %v367 = vpop.f32.mrb[0].mxu0
  %v368 = vadd.f32 0.0, %v367
  %v369 = vpop.f32.mrb[0].mxu0
  %370 = vdwg.mxu0
  %v371 = vadd.f32 %v188, %v368
  %v372 = vadd.f32 %v371, %v296
  %v373 = vtanh.pop %v372
  %374 = vst [vmem:[#allocation2 + $0x8] sm:$0xff] %v373
  %375 = vmatprep.subr.mxu0 0.0
  %376 = vmatpush1.msra.mxu0 %v25
  %377 = vmatprep.subr.mxu0 0.0
  %378 = vmatpush1.msra.mxu0 %v26
  %379 = vmatprep.subr.mxu0 0.0
  %380 = vmatpush1.msra.mxu0 %v27
  %381 = vmatprep.subr.mxu0 0.0
  %382 = vmatpush1.msra.mxu0 %v28
  %383 = vmatprep.subr.mxu0 0.0
  %384 = vmatpush1.msra.mxu0 %v29
  %385 = vmatprep.subr.mxu0 0.0
  %386 = vmatpush1.msra.mxu0 %v30
  %387 = vmatprep.subr.mxu0 0.0
  %388 = vmatpush1.msra.mxu0 %v31
  %389 = vmatprep.subr.mxu0 0.0
  %390 = vmatpush1.msra.mxu0 %v32
  %391 = vmatprep.subr.mxu0 0.0
  %392 = vmatpush1.msra.mxu0 %v33
  %393 = vmatprep.subr.mxu0 0.0
  %394 = vmatpush1.msra.mxu0 %v34
  %395 = vmatprep.subr.mxu0 0.0
  %396 = vmatpush1.msra.mxu0 %v35
  %397 = vmatprep.subr.mxu0 0.0
  %398 = vmatpush1.msra.mxu0 %v36
  %399 = vmatprep.subr.mxu0 0.0
  %400 = vmatpush1.msra.mxu0 %v37
  %401 = vmatprep.subr.mxu0 0.0
  %402 = vmatpush1.msra.mxu0 %v38
  %403 = vmatprep.subr.mxu0 0.0
  %404 = vmatpush1.msra.mxu0 %v39
  %405 = vmatprep.subr.mxu0 0.0
  %406 = vmatpush1.msra.mxu0 %v40
  %407 = vmatprep.subr.mxu0 0.0
  %408 = vmatpush1.msra.mxu0 0.0
  %409 = vmatprep.subr.mxu0 0.0
  %410 = vmatpush1.msra.mxu0 0.0
  %411 = vmatprep.subr.mxu0 0.0
  %412 = vmatpush1.msra.mxu0 0.0
  %413 = vmatprep.subr.mxu0 0.0
  %414 = vmatpush1.msra.mxu0 0.0
  %415 = vmatprep.subr.mxu0 0.0
  %416 = vmatpush1.msra.mxu0 0.0
  %417 = vmatprep.subr.mxu0 0.0
  %418 = vmatpush1.msra.mxu0 0.0
  %419 = vmatprep.subr.mxu0 0.0
  %420 = vmatpush1.msra.mxu0 0.0
  %421 = vmatprep.subr.mxu0 0.0
  %422 = vmatpush1.msra.mxu0 0.0
  %423 = vmatprep.subr.mxu0 0.0
  %424 = vmatpush1.msra.mxu0 0.0
  %425 = vmatprep.subr.mxu0 0.0
  %426 = vmatpush1.msra.mxu0 0.0
  %427 = vmatprep.subr.mxu0 0.0
  %428 = vmatpush1.msra.mxu0 0.0
  %429 = vmatprep.subr.mxu0 0.0
  %430 = vmatpush1.msra.mxu0 0.0
  %431 = vmatprep.subr.mxu0 0.0
  %432 = vmatpush1.msra.mxu0 0.0
  %433 = vmatprep.subr.mxu0 0.0
  %434 = vmatpush1.msra.mxu0 0.0
  %435 = vmatprep.subr.mxu0 0.0
  %436 = vmatpush1.msra.mxu0 0.0
  %437 = vmatprep.subr.mxu0 0.0
  %438 = vmatpush1.msra.mxu0 0.0
  %439 = vmatprep.mubr.f32.mxu0 0.0
  %440 = vmatmul.mubr.f32.gmra.mrb[0].mxu0 %v373
  %v441 = vpop.f32.mrb[0].mxu0
  %v442 = vadd.f32 0.0, %v441
  %v443 = vpop.f32.mrb[0].mxu0
  %444 = vdwg.mxu0
  %v445 = vadd.f32 %v193, %v442
  %v446 = vadd.f32 %v445, %v296
  %v447 = vtanh.pop %v446
  %448 = vst [vmem:[#allocation2 + $0x10] sm:$0xff] %v447
  %449 = vmatprep.subr.mxu0 0.0
  %450 = vmatpush1.msra.mxu0 %v25
  %451 = vmatprep.subr.mxu0 0.0
  %452 = vmatpush1.msra.mxu0 %v26
  %453 = vmatprep.subr.mxu0 0.0
  %454 = vmatpush1.msra.mxu0 %v27
  %455 = vmatprep.subr.mxu0 0.0
  %456 = vmatpush1.msra.mxu0 %v28
  %457 = vmatprep.subr.mxu0 0.0
  %458 = vmatpush1.msra.mxu0 %v29
  %459 = vmatprep.subr.mxu0 0.0
  %460 = vmatpush1.msra.mxu0 %v30
  %461 = vmatprep.subr.mxu0 0.0
  %462 = vmatpush1.msra.mxu0 %v31
  %463 = vmatprep.subr.mxu0 0.0
  %464 = vmatpush1.msra.mxu0 %v32
  %465 = vmatprep.subr.mxu0 0.0
  %466 = vmatpush1.msra.mxu0 %v33
  %467 = vmatprep.subr.mxu0 0.0
  %468 = vmatpush1.msra.mxu0 %v34
  %469 = vmatprep.subr.mxu0 0.0
  %470 = vmatpush1.msra.mxu0 %v35
  %471 = vmatprep.subr.mxu0 0.0
  %472 = vmatpush1.msra.mxu0 %v36
  %473 = vmatprep.subr.mxu0 0.0
  %474 = vmatpush1.msra.mxu0 %v37
  %475 = vmatprep.subr.mxu0 0.0
  %476 = vmatpush1.msra.mxu0 %v38
  %477 = vmatprep.subr.mxu0 0.0
  %478 = vmatpush1.msra.mxu0 %v39
  %479 = vmatprep.subr.mxu0 0.0
  %480 = vmatpush1.msra.mxu0 %v40
  %481 = vmatprep.subr.mxu0 0.0
  %482 = vmatpush1.msra.mxu0 0.0
  %483 = vmatprep.subr.mxu0 0.0
  %484 = vmatpush1.msra.mxu0 0.0
  %485 = vmatprep.subr.mxu0 0.0
  %486 = vmatpush1.msra.mxu0 0.0
  %487 = vmatprep.subr.mxu0 0.0
  %488 = vmatpush1.msra.mxu0 0.0
  %489 = vmatprep.subr.mxu0 0.0
  %490 = vmatpush1.msra.mxu0 0.0
  %491 = vmatprep.subr.mxu0 0.0
  %492 = vmatpush1.msra.mxu0 0.0
  %493 = vmatprep.subr.mxu0 0.0
  %494 = vmatpush1.msra.mxu0 0.0
  %495 = vmatprep.subr.mxu0 0.0
  %496 = vmatpush1.msra.mxu0 0.0
  %497 = vmatprep.subr.mxu0 0.0
  %498 = vmatpush1.msra.mxu0 0.0
  %499 = vmatprep.subr.mxu0 0.0
  %500 = vmatpush1.msra.mxu0 0.0
  %501 = vmatprep.subr.mxu0 0.0
  %502 = vmatpush1.msra.mxu0 0.0
  %503 = vmatprep.subr.mxu0 0.0
  %504 = vmatpush1.msra.mxu0 0.0
  %505 = vmatprep.subr.mxu0 0.0
  %506 = vmatpush1.msra.mxu0 0.0
  %507 = vmatprep.subr.mxu0 0.0
  %508 = vmatpush1.msra.mxu0 0.0
  %509 = vmatprep.subr.mxu0 0.0
  %510 = vmatpush1.msra.mxu0 0.0
  %511 = vmatprep.subr.mxu0 0.0
  %512 = vmatpush1.msra.mxu0 0.0
  %513 = vmatprep.mubr.f32.mxu0 0.0
  %514 = vmatmul.mubr.f32.gmra.mrb[0].mxu0 %v447
  %v515 = vpop.f32.mrb[0].mxu0
  %v516 = vadd.f32 0.0, %v515
  %v517 = vpop.f32.mrb[0].mxu0
  %518 = vdwg.mxu0
  %v519 = vadd.f32 %v198, %v516
  %v520 = vadd.f32 %v519, %v296
  %v521 = vtanh.pop %v520
  %522 = vst [vmem:[#allocation2 + $0x18] sm:$0xff] %v521
  %523 = vmatprep.subr.mxu0 0.0
  %524 = vmatpush1.msra.mxu0 %v25
  %525 = vmatprep.subr.mxu0 0.0
  %526 = vmatpush1.msra.mxu0 %v26
  %527 = vmatprep.subr.mxu0 0.0
  %528 = vmatpush1.msra.mxu0 %v27
  %529 = vmatprep.subr.mxu0 0.0
  %530 = vmatpush1.msra.mxu0 %v28
  %531 = vmatprep.subr.mxu0 0.0
  %532 = vmatpush1.msra.mxu0 %v29
  %533 = vmatprep.subr.mxu0 0.0
  %534 = vmatpush1.msra.mxu0 %v30
  %535 = vmatprep.subr.mxu0 0.0
  %536 = vmatpush1.msra.mxu0 %v31
  %537 = vmatprep.subr.mxu0 0.0
  %538 = vmatpush1.msra.mxu0 %v32
  %539 = vmatprep.subr.mxu0 0.0
  %540 = vmatpush1.msra.mxu0 %v33
  %541 = vmatprep.subr.mxu0 0.0
  %542 = vmatpush1.msra.mxu0 %v34
  %543 = vmatprep.subr.mxu0 0.0
  %544 = vmatpush1.msra.mxu0 %v35
  %545 = vmatprep.subr.mxu0 0.0
  %546 = vmatpush1.msra.mxu0 %v36
  %547 = vmatprep.subr.mxu0 0.0
  %548 = vmatpush1.msra.mxu0 %v37
  %549 = vmatprep.subr.mxu0 0.0
  %550 = vmatpush1.msra.mxu0 %v38
  %551 = vmatprep.subr.mxu0 0.0
  %552 = vmatpush1.msra.mxu0 %v39
  %553 = vmatprep.subr.mxu0 0.0
  %554 = vmatpush1.msra.mxu0 %v40
  %555 = vmatprep.subr.mxu0 0.0
  %556 = vmatpush1.msra.mxu0 0.0
  %557 = vmatprep.subr.mxu0 0.0
  %558 = vmatpush1.msra.mxu0 0.0
  %559 = vmatprep.subr.mxu0 0.0
  %560 = vmatpush1.msra.mxu0 0.0
  %561 = vmatprep.subr.mxu0 0.0
  %562 = vmatpush1.msra.mxu0 0.0
  %563 = vmatprep.subr.mxu0 0.0
  %564 = vmatpush1.msra.mxu0 0.0
  %565 = vmatprep.subr.mxu0 0.0
  %566 = vmatpush1.msra.mxu0 0.0
  %567 = vmatprep.subr.mxu0 0.0
  %568 = vmatpush1.msra.mxu0 0.0
  %569 = vmatprep.subr.mxu0 0.0
  %570 = vmatpush1.msra.mxu0 0.0
  %571 = vmatprep.subr.mxu0 0.0
  %572 = vmatpush1.msra.mxu0 0.0
  %573 = vmatprep.subr.mxu0 0.0
  %574 = vmatpush1.msra.mxu0 0.0
  %575 = vmatprep.subr.mxu0 0.0
  %576 = vmatpush1.msra.mxu0 0.0
  %577 = vmatprep.subr.mxu0 0.0
  %578 = vmatpush1.msra.mxu0 0.0
  %579 = vmatprep.subr.mxu0 0.0
  %580 = vmatpush1.msra.mxu0 0.0
  %581 = vmatprep.subr.mxu0 0.0
  %582 = vmatpush1.msra.mxu0 0.0
  %583 = vmatprep.subr.mxu0 0.0
  %584 = vmatpush1.msra.mxu0 0.0
  %585 = vmatprep.subr.mxu0 0.0
  %586 = vmatpush1.msra.mxu0 0.0
  %587 = vmatprep.mubr.f32.mxu0 0.0
  %588 = vmatmul.mubr.f32.gmra.mrb[0].mxu0 %v521
  %v589 = vpop.f32.mrb[0].mxu0
  %v590 = vadd.f32 0.0, %v589
  %v591 = vpop.f32.mrb[0].mxu0
  %592 = vdwg.mxu0
  %v593 = vadd.f32 %v203, %v590
  %v594 = vadd.f32 %v593, %v296
  %v595 = vtanh.pop %v594
  %596 = vst [vmem:[#allocation2 + $0x20] sm:$0xff] %v595
  %597 = vmatprep.subr.mxu0 0.0
  %598 = vmatpush1.msra.mxu0 %v25
  %599 = vmatprep.subr.mxu0 0.0
  %600 = vmatpush1.msra.mxu0 %v26
  %601 = vmatprep.subr.mxu0 0.0
  %602 = vmatpush1.msra.mxu0 %v27
  %603 = vmatprep.subr.mxu0 0.0
  %604 = vmatpush1.msra.mxu0 %v28
  %605 = vmatprep.subr.mxu0 0.0
  %606 = vmatpush1.msra.mxu0 %v29
  %607 = vmatprep.subr.mxu0 0.0
  %608 = vmatpush1.msra.mxu0 %v30
  %609 = vmatprep.subr.mxu0 0.0
  %610 = vmatpush1.msra.mxu0 %v31
  %611 = vmatprep.subr.mxu0 0.0
  %612 = vmatpush1.msra.mxu0 %v32
  %613 = vmatprep.subr.mxu0 0.0
  %614 = vmatpush1.msra.mxu0 %v33
  %615 = vmatprep.subr.mxu0 0.0
  %616 = vmatpush1.msra.mxu0 %v34
  %617 = vmatprep.subr.mxu0 0.0
  %618 = vmatpush1.msra.mxu0 %v35
  %619 = vmatprep.subr.mxu0 0.0
  %620 = vmatpush1.msra.mxu0 %v36
  %621 = vmatprep.subr.mxu0 0.0
  %622 = vmatpush1.msra.mxu0 %v37
  %623 = vmatprep.subr.mxu0 0.0
  %624 = vmatpush1.msra.mxu0 %v38
  %625 = vmatprep.subr.mxu0 0.0
  %626 = vmatpush1.msra.mxu0 %v39
  %627 = vmatprep.subr.mxu0 0.0
  %628 = vmatpush1.msra.mxu0 %v40
  %629 = vmatprep.subr.mxu0 0.0
  %630 = vmatpush1.msra.mxu0 0.0
  %631 = vmatprep.subr.mxu0 0.0
  %632 = vmatpush1.msra.mxu0 0.0
  %633 = vmatprep.subr.mxu0 0.0
  %634 = vmatpush1.msra.mxu0 0.0
  %635 = vmatprep.subr.mxu0 0.0
  %636 = vmatpush1.msra.mxu0 0.0
  %637 = vmatprep.subr.mxu0 0.0
  %638 = vmatpush1.msra.mxu0 0.0
  %639 = vmatprep.subr.mxu0 0.0
  %640 = vmatpush1.msra.mxu0 0.0
  %641 = vmatprep.subr.mxu0 0.0
  %642 = vmatpush1.msra.mxu0 0.0
  %643 = vmatprep.subr.mxu0 0.0
  %644 = vmatpush1.msra.mxu0 0.0
  %645 = vmatprep.subr.mxu0 0.0
  %646 = vmatpush1.msra.mxu0 0.0
  %647 = vmatprep.subr.mxu0 0.0
  %648 = vmatpush1.msra.mxu0 0.0
  %649 = vmatprep.subr.mxu0 0.0
  %650 = vmatpush1.msra.mxu0 0.0
  %651 = vmatprep.subr.mxu0 0.0
  %652 = vmatpush1.msra.mxu0 0.0
  %653 = vmatprep.subr.mxu0 0.0
  %654 = vmatpush1.msra.mxu0 0.0
  %655 = vmatprep.subr.mxu0 0.0
  %656 = vmatpush1.msra.mxu0 0.0
  %657 = vmatprep.subr.mxu0 0.0
  %658 = vmatpush1.msra.mxu0 0.0
  %659 = vmatprep.subr.mxu0 0.0
  %660 = vmatpush1.msra.mxu0 0.0
  %661 = vmatprep.mubr.f32.mxu0 0.0
  %662 = vmatmul.mubr.f32.gmra.mrb[0].mxu0 %v595
  %v663 = vpop.f32.mrb[0].mxu0
  %v664 = vadd.f32 0.0, %v663
  %v665 = vpop.f32.mrb[0].mxu0
  %666 = vdwg.mxu0
  %v667 = vadd.f32 %v208, %v664
  %v668 = vadd.f32 %v667, %v296
  %v669 = vtanh.pop %v668
  %670 = vst [vmem:[#allocation2 + $0x28] sm:$0xff] %v669
  %671 = vmatprep.subr.mxu0 0.0
  %672 = vmatpush1.msra.mxu0 %v25
  %673 = vmatprep.subr.mxu0 0.0
  %674 = vmatpush1.msra.mxu0 %v26
  %675 = vmatprep.subr.mxu0 0.0
  %676 = vmatpush1.msra.mxu0 %v27
  %677 = vmatprep.subr.mxu0 0.0
  %678 = vmatpush1.msra.mxu0 %v28
  %679 = vmatprep.subr.mxu0 0.0
  %680 = vmatpush1.msra.mxu0 %v29
  %681 = vmatprep.subr.mxu0 0.0
  %682 = vmatpush1.msra.mxu0 %v30
  %683 = vmatprep.subr.mxu0 0.0
  %684 = vmatpush1.msra.mxu0 %v31
  %685 = vmatprep.subr.mxu0 0.0
  %686 = vmatpush1.msra.mxu0 %v32
  %687 = vmatprep.subr.mxu0 0.0
  %688 = vmatpush1.msra.mxu0 %v33
  %689 = vmatprep.subr.mxu0 0.0
  %690 = vmatpush1.msra.mxu0 %v34
  %691 = vmatprep.subr.mxu0 0.0
  %692 = vmatpush1.msra.mxu0 %v35
  %693 = vmatprep.subr.mxu0 0.0
  %694 = vmatpush1.msra.mxu0 %v36
  %695 = vmatprep.subr.mxu0 0.0
  %696 = vmatpush1.msra.mxu0 %v37
  %697 = vmatprep.subr.mxu0 0.0
  %698 = vmatpush1.msra.mxu0 %v38
  %699 = vmatprep.subr.mxu0 0.0
  %700 = vmatpush1.msra.mxu0 %v39
  %701 = vmatprep.subr.mxu0 0.0
  %702 = vmatpush1.msra.mxu0 %v40
  %703 = vmatprep.subr.mxu0 0.0
  %704 = vmatpush1.msra.mxu0 0.0
  %705 = vmatprep.subr.mxu0 0.0
  %706 = vmatpush1.msra.mxu0 0.0
  %707 = vmatprep.subr.mxu0 0.0
  %708 = vmatpush1.msra.mxu0 0.0
  %709 = vmatprep.subr.mxu0 0.0
  %710 = vmatpush1.msra.mxu0 0.0
  %711 = vmatprep.subr.mxu0 0.0
  %712 = vmatpush1.msra.mxu0 0.0
  %713 = vmatprep.subr.mxu0 0.0
  %714 = vmatpush1.msra.mxu0 0.0
  %715 = vmatprep.subr.mxu0 0.0
  %716 = vmatpush1.msra.mxu0 0.0
  %717 = vmatprep.subr.mxu0 0.0
  %718 = vmatpush1.msra.mxu0 0.0
  %719 = vmatprep.subr.mxu0 0.0
  %720 = vmatpush1.msra.mxu0 0.0
  %721 = vmatprep.subr.mxu0 0.0
  %722 = vmatpush1.msra.mxu0 0.0
  %723 = vmatprep.subr.mxu0 0.0
  %724 = vmatpush1.msra.mxu0 0.0
  %725 = vmatprep.subr.mxu0 0.0
  %726 = vmatpush1.msra.mxu0 0.0
  %727 = vmatprep.subr.mxu0 0.0
  %728 = vmatpush1.msra.mxu0 0.0
  %729 = vmatprep.subr.mxu0 0.0
  %730 = vmatpush1.msra.mxu0 0.0
  %731 = vmatprep.subr.mxu0 0.0
  %732 = vmatpush1.msra.mxu0 0.0
  %733 = vmatprep.subr.mxu0 0.0
  %734 = vmatpush1.msra.mxu0 0.0
  %735 = vmatprep.mubr.f32.mxu0 0.0
  %736 = vmatmul.mubr.f32.gmra.mrb[0].mxu0 %v669
  %v737 = vpop.f32.mrb[0].mxu0
  %v738 = vadd.f32 0.0, %v737
  %v739 = vpop.f32.mrb[0].mxu0
  %740 = vdwg.mxu0
  %v741 = vadd.f32 %v213, %v738
  %v742 = vadd.f32 %v741, %v296
  %v743 = vtanh.pop %v742
  %744 = vst [vmem:[#allocation2 + $0x30] sm:$0xff] %v743
  %745 = vmatprep.subr.mxu0 0.0
  %746 = vmatpush1.msra.mxu0 %v25
  %747 = vmatprep.subr.mxu0 0.0
  %748 = vmatpush1.msra.mxu0 %v26
  %749 = vmatprep.subr.mxu0 0.0
  %750 = vmatpush1.msra.mxu0 %v27
  %751 = vmatprep.subr.mxu0 0.0
  %752 = vmatpush1.msra.mxu0 %v28
  %753 = vmatprep.subr.mxu0 0.0
  %754 = vmatpush1.msra.mxu0 %v29
  %755 = vmatprep.subr.mxu0 0.0
  %756 = vmatpush1.msra.mxu0 %v30
  %757 = vmatprep.subr.mxu0 0.0
  %758 = vmatpush1.msra.mxu0 %v31
  %759 = vmatprep.subr.mxu0 0.0
  %760 = vmatpush1.msra.mxu0 %v32
  %761 = vmatprep.subr.mxu0 0.0
  %762 = vmatpush1.msra.mxu0 %v33
  %763 = vmatprep.subr.mxu0 0.0
  %764 = vmatpush1.msra.mxu0 %v34
  %765 = vmatprep.subr.mxu0 0.0
  %766 = vmatpush1.msra.mxu0 %v35
  %767 = vmatprep.subr.mxu0 0.0
  %768 = vmatpush1.msra.mxu0 %v36
  %769 = vmatprep.subr.mxu0 0.0
  %770 = vmatpush1.msra.mxu0 %v37
  %771 = vmatprep.subr.mxu0 0.0
  %772 = vmatpush1.msra.mxu0 %v38
  %773 = vmatprep.subr.mxu0 0.0
  %774 = vmatpush1.msra.mxu0 %v39
  %775 = vmatprep.subr.mxu0 0.0
  %776 = vmatpush1.msra.mxu0 %v40
  %777 = vmatprep.subr.mxu0 0.0
  %778 = vmatpush1.msra.mxu0 0.0
  %779 = vmatprep.subr.mxu0 0.0
  %780 = vmatpush1.msra.mxu0 0.0
  %781 = vmatprep.subr.mxu0 0.0
  %782 = vmatpush1.msra.mxu0 0.0
  %783 = vmatprep.subr.mxu0 0.0
  %784 = vmatpush1.msra.mxu0 0.0
  %785 = vmatprep.subr.mxu0 0.0
  %786 = vmatpush1.msra.mxu0 0.0
  %787 = vmatprep.subr.mxu0 0.0
  %788 = vmatpush1.msra.mxu0 0.0
  %789 = vmatprep.subr.mxu0 0.0
  %790 = vmatpush1.msra.mxu0 0.0
  %791 = vmatprep.subr.mxu0 0.0
  %792 = vmatpush1.msra.mxu0 0.0
  %793 = vmatprep.subr.mxu0 0.0
  %794 = vmatpush1.msra.mxu0 0.0
  %795 = vmatprep.subr.mxu0 0.0
  %796 = vmatpush1.msra.mxu0 0.0
  %797 = vmatprep.subr.mxu0 0.0
  %798 = vmatpush1.msra.mxu0 0.0
  %799 = vmatprep.subr.mxu0 0.0
  %800 = vmatpush1.msra.mxu0 0.0
  %801 = vmatprep.subr.mxu0 0.0
  %802 = vmatpush1.msra.mxu0 0.0
  %803 = vmatprep.subr.mxu0 0.0
  %804 = vmatpush1.msra.mxu0 0.0
  %805 = vmatprep.subr.mxu0 0.0
  %806 = vmatpush1.msra.mxu0 0.0
  %807 = vmatprep.subr.mxu0 0.0
  %808 = vmatpush1.msra.mxu0 0.0
  %809 = vmatprep.mubr.f32.mxu0 0.0
  %810 = vmatmul.mubr.f32.gmra.mrb[0].mxu0 %v743
  %v811 = vpop.f32.mrb[0].mxu0
  %v812 = vadd.f32 0.0, %v811
  %v813 = vpop.f32.mrb[0].mxu0
  %814 = vdwg.mxu0
  %v815 = vadd.f32 %v218, %v812
  %v816 = vadd.f32 %v815, %v296
  %v817 = vtanh.pop %v816
  %818 = vst [vmem:[#allocation2 + $0x38] sm:$0xff] %v817
  %819 = vst [vmem:[%s7] sm:$0xff] %v817
  %v820 = vld [vmem:[#allocation2] sm:$0xff]
  %v821 = vld [vmem:[#allocation2 + $0x8] sm:$0xff]
  %v822 = vld [vmem:[#allocation2 + $0x10] sm:$0xff]
  %v823 = vld [vmem:[#allocation2 + $0x18] sm:$0xff]
  %v824 = vld [vmem:[#allocation2 + $0x20] sm:$0xff]
  %v825 = vld [vmem:[#allocation2 + $0x28] sm:$0xff]
  %v826 = vld [vmem:[#allocation2 + $0x30] sm:$0xff]
  %v827 = vld [vmem:[#allocation2 + $0x38] sm:$0xff]
  %v828 = vld [vmem:[%s4] sm:$0xff]
  %v829 = vld [vmem:[%s4 + $0x8] sm:$0xff]
  %v830 = vld [vmem:[%s4 + $0x10] sm:$0xff]
  %v831 = vld [vmem:[%s4 + $0x18] sm:$0xff]
  %v832 = vld [vmem:[%s4 + $0x20] sm:$0xff]
  %v833 = vld [vmem:[%s4 + $0x28] sm:$0xff]
  %v834 = vld [vmem:[%s4 + $0x30] sm:$0xff]
  %v835 = vld [vmem:[%s4 + $0x38] sm:$0xff]
  %v836 = vld [vmem:[%s4 + $0x40] sm:$0xff]
  %v837 = vld [vmem:[%s4 + $0x48] sm:$0xff]
  %v838 = vld [vmem:[%s4 + $0x50] sm:$0xff]
  %v839 = vld [vmem:[%s4 + $0x58] sm:$0xff]
  %v840 = vld [vmem:[%s4 + $0x60] sm:$0xff]
  %v841 = vld [vmem:[%s4 + $0x68] sm:$0xff]
  %v842 = vld [vmem:[%s4 + $0x70] sm:$0xff]
  %v843 = vld [vmem:[%s4 + $0x78] sm:$0xff]
  %v844 = vld [vmem:[%s5] sm:$0x1]
  %v846 = vlaneseq
  %v847 = vshrl.u32 %v846, 7
  %v848 = vsub.s32 0, %v847
  %v849 = vrot.slane %v844, %v848
  %851 = vmatprep.subr.mxu0 0.0
  %852 = vmatpush1.msra.mxu0 %v828
  %853 = vmatprep.subr.mxu0 0.0
  %854 = vmatpush1.msra.mxu0 %v829
  %855 = vmatprep.subr.mxu0 0.0
  %856 = vmatpush1.msra.mxu0 %v830
  %857 = vmatprep.subr.mxu0 0.0
  %858 = vmatpush1.msra.mxu0 %v831
  %859 = vmatprep.subr.mxu0 0.0
  %860 = vmatpush1.msra.mxu0 %v832
  %861 = vmatprep.subr.mxu0 0.0
  %862 = vmatpush1.msra.mxu0 %v833
  %863 = vmatprep.subr.mxu0 0.0
  %864 = vmatpush1.msra.mxu0 %v834
  %865 = vmatprep.subr.mxu0 0.0
  %866 = vmatpush1.msra.mxu0 %v835
  %867 = vmatprep.subr.mxu0 0.0
  %868 = vmatpush1.msra.mxu0 %v836
  %869 = vmatprep.subr.mxu0 0.0
  %870 = vmatpush1.msra.mxu0 %v837
  %871 = vmatprep.subr.mxu0 0.0
  %872 = vmatpush1.msra.mxu0 %v838
  %873 = vmatprep.subr.mxu0 0.0
  %874 = vmatpush1.msra.mxu0 %v839
  %875 = vmatprep.subr.mxu0 0.0
  %876 = vmatpush1.msra.mxu0 %v840
  %877 = vmatprep.subr.mxu0 0.0
  %878 = vmatpush1.msra.mxu0 %v841
  %879 = vmatprep.subr.mxu0 0.0
  %880 = vmatpush1.msra.mxu0 %v842
  %881 = vmatprep.subr.mxu0 0.0
  %882 = vmatpush1.msra.mxu0 %v843
  %883 = vmatprep.subr.mxu0 0.0
  %884 = vmatpush1.msra.mxu0 0.0
  %885 = vmatprep.subr.mxu0 0.0
  %886 = vmatpush1.msra.mxu0 0.0
  %887 = vmatprep.subr.mxu0 0.0
  %888 = vmatpush1.msra.mxu0 0.0
  %889 = vmatprep.subr.mxu0 0.0
  %890 = vmatpush1.msra.mxu0 0.0
  %891 = vmatprep.subr.mxu0 0.0
  %892 = vmatpush1.msra.mxu0 0.0
  %893 = vmatprep.subr.mxu0 0.0
  %894 = vmatpush1.msra.mxu0 0.0
  %895 = vmatprep.subr.mxu0 0.0
  %896 = vmatpush1.msra.mxu0 0.0
  %897 = vmatprep.subr.mxu0 0.0
  %898 = vmatpush1.msra.mxu0 0.0
  %899 = vmatprep.subr.mxu0 0.0
  %900 = vmatpush1.msra.mxu0 0.0
  %901 = vmatprep.subr.mxu0 0.0
  %902 = vmatpush1.msra.mxu0 0.0
  %903 = vmatprep.subr.mxu0 0.0
  %904 = vmatpush1.msra.mxu0 0.0
  %905 = vmatprep.subr.mxu0 0.0
  %906 = vmatpush1.msra.mxu0 0.0
  %907 = vmatprep.subr.mxu0 0.0
  %908 = vmatpush1.msra.mxu0 0.0
  %909 = vmatprep.subr.mxu0 0.0
  %910 = vmatpush1.msra.mxu0 0.0
  %911 = vmatprep.subr.mxu0 0.0
  %912 = vmatpush1.msra.mxu0 0.0
  %913 = vmatprep.subr.mxu0 0.0
  %914 = vmatpush1.msra.mxu0 0.0
  %915 = vmatprep.mubr.f32.mxu0 0.0
  %916 = vmatmul.mubr.f32.gmra.mrb[0].mxu0 %v820
  %v917 = vpop.f32.mrb[0].mxu0
  %v918 = vadd.f32 %v849, %v917
  %v919 = vpop.f32.mrb[0].mxu0
  %920 = vmatprep.mubr.f32.mxu0 0.0
  %921 = vmatmul.mubr.f32.gmra.mrb[0].mxu0 %v821
  %v922 = vpop.f32.mrb[0].mxu0
  %v923 = vadd.f32 %v849, %v922
  %v924 = vpop.f32.mrb[0].mxu0
  %925 = vmatprep.mubr.f32.mxu0 0.0
  %926 = vmatmul.mubr.f32.gmra.mrb[0].mxu0 %v822
  %v927 = vpop.f32.mrb[0].mxu0
  %v928 = vadd.f32 %v849, %v927
  %v929 = vpop.f32.mrb[0].mxu0
  %930 = vmatprep.mubr.f32.mxu0 0.0
  %931 = vmatmul.mubr.f32.gmra.mrb[0].mxu0 %v823
  %v932 = vpop.f32.mrb[0].mxu0
  %v933 = vadd.f32 %v849, %v932
  %v934 = vpop.f32.mrb[0].mxu0
  %935 = vmatprep.mubr.f32.mxu0 0.0
  %936 = vmatmul.mubr.f32.gmra.mrb[0].mxu0 %v824
  %v937 = vpop.f32.mrb[0].mxu0
  %v938 = vadd.f32 %v849, %v937
  %v939 = vpop.f32.mrb[0].mxu0
  %940 = vmatprep.mubr.f32.mxu0 0.0
  %941 = vmatmul.mubr.f32.gmra.mrb[0].mxu0 %v825
  %v942 = vpop.f32.mrb[0].mxu0
  %v943 = vadd.f32 %v849, %v942
  %v944 = vpop.f32.mrb[0].mxu0
  %945 = vmatprep.mubr.f32.mxu0 0.0
  %946 = vmatmul.mubr.f32.gmra.mrb[0].mxu0 %v826
  %v947 = vpop.f32.mrb[0].mxu0
  %v948 = vadd.f32 %v849, %v947
  %v949 = vpop.f32.mrb[0].mxu0
  %950 = vmatprep.mubr.f32.mxu0 0.0
  %951 = vmatmul.mubr.f32.gmra.mrb[0].mxu0 %v827
  %v952 = vpop.f32.mrb[0].mxu0
  %v953 = vadd.f32 %v849, %v952
  %v954 = vpop.f32.mrb[0].mxu0
  %955 = vdwg.mxu0
  %956 = vst [vmem:[%s6] sm:$0xff] %v918
  %957 = vst [vmem:[%s6 + $0x8] sm:$0xff] %v923
  %958 = vst [vmem:[%s6 + $0x10] sm:$0xff] %v928
  %959 = vst [vmem:[%s6 + $0x18] sm:$0xff] %v933
  %960 = vst [vmem:[%s6 + $0x20] sm:$0xff] %v938
  %961 = vst [vmem:[%s6 + $0x28] sm:$0xff] %v943
  %962 = vst [vmem:[%s6 + $0x30] sm:$0xff] %v948
  %963 = vst [vmem:[%s6 + $0x38] sm:$0xff] %v953
  // Predicated region
  $region26: #{lang_model_forward.1} parent=0 // pred_check
    _
  $region27: #{lang_model_forward.1} parent=0 // pred_check_branch
    %965 = sbr.rel (0) target = $region29
  $region28: #{lang_model_forward.1} parent=0 // pred_region
    _
  $region29: #{lang_model_forward.1} parent=0 // pred_fallthru
    _
  // Predicated region
  $region30: #{lang_model_forward.1} parent=0 // pred_check
    _
  $region31: #{lang_model_forward.1} parent=0 // pred_check_branch
    %967 = sbr.rel (0) target = $region33
  $region32: #{lang_model_forward.1} parent=0 // pred_region
    _
  $region33: #{lang_model_forward.1} parent=0 // pred_fallthru
    _
  // Predicated region
  $region34: #{lang_model_forward.1} parent=0 // pred_check
    _
  $region35: #{lang_model_forward.1} parent=0 // pred_check_branch
    %969 = sbr.rel (0) target = $region37
  $region36: #{lang_model_forward.1} parent=0 // pred_region
    _
  $region37: #{lang_model_forward.1} parent=0 // pred_fallthru
    _
  // Predicated region
  $region38: #{lang_model_forward.1} parent=0 // pred_check
    _
  $region39: #{lang_model_forward.1} parent=0 // pred_check_branch
    %971 = sbr.rel (0) target = $region41
  $region40: #{lang_model_forward.1} parent=0 // pred_region
    _
  $region41: #{lang_model_forward.1} parent=0 // pred_fallthru
    _

</llo_original>
